<compile_context>
chip_gen: v6e
topology: v6e:2x2x1
jax: 0.10.0
libtpu: 0.0.40
codegen_flags: <defaults>
</compile_context>

<pallas_src>
import jax
import jax.numpy as jnp
from jax.experimental import pallas as pl
from jax.experimental.pallas import tpu as pltpu

_LANE = 128


def _ea_fwd_kernel(m_ref, logs_ref, x_ref, mask_ref, y_ref, ld_ref):
    # m_ref/logs_ref: (C, 1)    x_ref: (C, Tb)    mask_ref: (1, Tb)
    # y_ref: (C, Tb)            ld_ref: (1, 128) f32 accumulator (per batch)
    t = pl.program_id(1)

    m = m_ref[...].astype(jnp.float32)          # (C, 1)
    logs = logs_ref[...].astype(jnp.float32)    # (C, 1)
    x = x_ref[...].astype(jnp.float32)          # (C, Tb)
    mask = mask_ref[...].astype(jnp.float32)    # (1, Tb)

    scale = jnp.exp(logs)                       # (C, 1)  (EUP)
    y = (m + scale * x) * mask                  # (C, Tb) (VPU)
    y_ref[...] = y.astype(y_ref.dtype)

    @pl.when(t == 0)
    def _init():
        ld_ref[...] = jnp.zeros_like(ld_ref)

    # sum_{c,t} logs[c] * mask[t]  ==  (sum_c logs) * (sum_t mask)
    partial = jnp.sum(logs) * jnp.sum(mask)
    ld_ref[...] += jnp.broadcast_to(partial, ld_ref.shape)


def _ea_rev_kernel(m_ref, logs_ref, x_ref, mask_ref, y_ref):
    m = m_ref[...].astype(jnp.float32)
    logs = logs_ref[...].astype(jnp.float32)
    x = x_ref[...].astype(jnp.float32)
    mask = mask_ref[...].astype(jnp.float32)
    y = (x - m) * jnp.exp(-logs) * mask
    y_ref[...] = y.astype(y_ref.dtype)


def elementwise_affine(x, x_mask, m, logs, reverse=False, *, block_t=512):
    """Pallas equivalent of ElementwiseAffine.forward(x, x_mask, reverse)."""
    B, C, T = x.shape
    assert m.shape == (C, 1) and logs.shape == (C, 1)
    assert x_mask.shape == (B, 1, T)

    # Choose a lane-dense time tile (multiple of 128) and pad T up to it.
    bt = min(block_t, ((T + _LANE - 1) // _LANE) * _LANE)
    bt = max(_LANE, (bt // _LANE) * _LANE)
    Tp = ((T + bt - 1) // bt) * bt
    if Tp != T:
        x = jnp.pad(x, ((0, 0), (0, 0), (0, Tp - T)))
        x_mask = jnp.pad(x_mask, ((0, 0), (0, 0), (0, Tp - T)))
    n_t = Tp // bt

    x_spec = pl.BlockSpec((None, C, bt), lambda b, t: (b, 0, t))
    mask_spec = pl.BlockSpec((None, 1, bt), lambda b, t: (b, 0, t))
    p_spec = pl.BlockSpec((C, 1), lambda b, t: (0, 0))

    itemsize = jnp.dtype(x.dtype).itemsize
    bytes_accessed = (2 * B * C * Tp + B * Tp + 2 * C) * itemsize
    cost = pl.CostEstimate(
        flops=4 * B * C * Tp,
        transcendentals=B * n_t * C,
        bytes_accessed=int(bytes_accessed),
    )

    if not reverse:
        y, ld = pl.pallas_call(
            _ea_fwd_kernel,
            out_shape=(
                jax.ShapeDtypeStruct((B, C, Tp), x.dtype),
                jax.ShapeDtypeStruct((B, 1, _LANE), jnp.float32),
            ),
            grid_spec=pltpu.PrefetchScalarGridSpec(
                num_scalar_prefetch=0,
                grid=(B, n_t),
                in_specs=[p_spec, p_spec, x_spec, mask_spec],
                out_specs=[
                    x_spec,
                    pl.BlockSpec((None, 1, _LANE), lambda b, t: (b, 0, 0)),
                ],
            ),
            compiler_params=pltpu.CompilerParams(
                dimension_semantics=("parallel", "arbitrary")),
            cost_estimate=cost,
        )(m, logs, x, x_mask)
        y = y[:, :, :T]
        logdet = ld[:, 0, 0]
        return y, logdet
    else:
        y = pl.pallas_call(
            _ea_rev_kernel,
            out_shape=jax.ShapeDtypeStruct((B, C, Tp), x.dtype),
            grid_spec=pltpu.PrefetchScalarGridSpec(
                num_scalar_prefetch=0,
                grid=(B, n_t),
                in_specs=[p_spec, p_spec, x_spec, mask_spec],
                out_specs=x_spec,
            ),
            compiler_params=pltpu.CompilerParams(
                dimension_semantics=("parallel", "parallel")),
            cost_estimate=cost,
        )(m, logs, x, x_mask)
        return y[:, :, :T]


if __name__ == "__main__":
    key = jax.random.PRNGKey(0)
    k1, k2, k3 = jax.random.split(key, 3)

    B, C, T = 2, 4, 16
    x = jax.random.normal(k1, (B, C, T), dtype=jnp.float32)
    lengths = jnp.array([16, 11], dtype=jnp.int32)
    x_mask = (jnp.arange(T)[None, None, :] < lengths[:, None, None]).astype(jnp.float32)
    m = 0.1 * jax.random.normal(k2, (C, 1), dtype=jnp.float32)
    logs = 0.1 * jax.random.normal(k3, (C, 1), dtype=jnp.float32)

    # Forward path: (y, logdet)
    y, logdet = elementwise_affine(x, x_mask, m, logs, reverse=False)
    y, logdet = jax.block_until_ready((y, logdet))

    y_ref = (m[None] + jnp.exp(logs)[None] * x) * x_mask
    logdet_ref = jnp.sum(logs[None] * x_mask, axis=(1, 2))
    assert y.shape == (B, C, T) and y.dtype == x.dtype
    assert logdet.shape == (B,)
    assert jnp.allclose(y, y_ref, atol=1e-5, rtol=1e-5)
    assert jnp.allclose(logdet, logdet_ref, atol=1e-5, rtol=1e-5)

    # Reverse path: inverts the forward transform where mask == 1.
    x_rev = elementwise_affine(y, x_mask, m, logs, reverse=True)
    x_rev = jax.block_until_ready(x_rev)
    x_rev_ref = (y - m[None]) * jnp.exp(-logs[None]) * x_mask
    assert jnp.allclose(x_rev, x_rev_ref, atol=1e-5, rtol=1e-5)
    assert jnp.allclose(x_rev, x * x_mask, atol=1e-5, rtol=1e-5)

    print("KERNEL_OK")
</pallas_src>

<mosaic_0001>
module attributes {stable_mosaic.version = 11 : i64} {
  func.func @_ea_fwd_kernel(%arg0: i32, %arg1: i32, %arg2: memref<4x1xf32, #tpu.memory_space<vmem>>, %arg3: memref<4x1xf32, #tpu.memory_space<vmem>>, %arg4: memref<1x4x128xf32, #tpu.memory_space<vmem>>, %arg5: memref<1x1x128xf32, #tpu.memory_space<vmem>>, %arg6: memref<1x4x128xf32, #tpu.memory_space<vmem>>, %arg7: memref<1x1x128xf32, #tpu.memory_space<vmem>>) attributes {dimension_semantics = [#tpu.dimension_semantics<parallel>, #tpu.dimension_semantics<arbitrary>], iteration_bounds = array<i64: 2, 1>, scalar_prefetch = 0 : i64, scratch_operands = 0 : i64, tpu.core_type = #tpu.core_type<tc>, window_params = [{pipeline_mode = #tpu.pipeline_mode<synchronous>, transform_indices = @transform_0, window_bounds = array<i64: 4, 1>}, {pipeline_mode = #tpu.pipeline_mode<synchronous>, transform_indices = @transform_1, window_bounds = array<i64: 4, 1>}, {transform_indices = @transform_2, window_bounds = array<i64: 1, 4, 128>}, {transform_indices = @transform_3, window_bounds = array<i64: 1, 1, 128>}, {transform_indices = @transform_4, window_bounds = array<i64: 1, 4, 128>}, {transform_indices = @transform_5, window_bounds = array<i64: 1, 1, 128>}]} {
    %c0 = arith.constant 0 : index
    %c0_0 = arith.constant 0 : index
    %0 = vector.load %arg2[%c0, %c0_0] : memref<4x1xf32, #tpu.memory_space<vmem>>, vector<4x1xf32>
    %c0_1 = arith.constant 0 : index
    %c0_2 = arith.constant 0 : index
    %1 = vector.load %arg3[%c0_1, %c0_2] : memref<4x1xf32, #tpu.memory_space<vmem>>, vector<4x1xf32>
    %c0_3 = arith.constant 0 : index
    %c0_4 = arith.constant 0 : index
    %c0_5 = arith.constant 0 : index
    %2 = vector.load %arg4[%c0_3, %c0_4, %c0_5] : memref<1x4x128xf32, #tpu.memory_space<vmem>>, vector<1x4x128xf32>
    %3 = vector.shape_cast %2 : vector<1x4x128xf32> to vector<4x128xf32>
    %c0_6 = arith.constant 0 : index
    %c0_7 = arith.constant 0 : index
    %c0_8 = arith.constant 0 : index
    %4 = vector.load %arg5[%c0_6, %c0_7, %c0_8] : memref<1x1x128xf32, #tpu.memory_space<vmem>>, vector<1x1x128xf32>
    %5 = vector.shape_cast %4 : vector<1x1x128xf32> to vector<1x128xf32>
    %6 = math.exp %1 : vector<4x1xf32>
    %7 = vector.broadcast %6 : vector<4x1xf32> to vector<4x128xf32>
    %8 = arith.mulf %7, %3 : vector<4x128xf32>
    %9 = vector.broadcast %0 : vector<4x1xf32> to vector<4x128xf32>
    %10 = arith.addf %9, %8 : vector<4x128xf32>
    %11 = vector.broadcast %5 : vector<1x128xf32> to vector<4x128xf32>
    %12 = arith.mulf %10, %11 : vector<4x128xf32>
    %c0_9 = arith.constant 0 : index
    %c0_10 = arith.constant 0 : index
    %c0_11 = arith.constant 0 : index
    %13 = vector.load %arg6[%c0_9, %c0_10, %c0_11] : memref<1x4x128xf32, #tpu.memory_space<vmem>>, vector<1x4x128xf32>
    %14 = vector.shape_cast %13 : vector<1x4x128xf32> to vector<4x128xf32>
    %15 = vector.shape_cast %12 : vector<4x128xf32> to vector<1x4x128xf32>
    tpu.vector_store %arg6[%c0_9, %c0_10, %c0_11], %15 {strides = array<i32>} : memref<1x4x128xf32, #tpu.memory_space<vmem>>, vector<1x4x128xf32>,
    %c0_i32 = arith.constant 0 : i32
    %16 = arith.cmpi eq, %arg1, %c0_i32 : i32
    %17 = arith.extui %16 : i1 to i32
    %c0_i32_12 = arith.constant 0 : i32
    %18 = arith.cmpi ne, %17, %c0_i32_12 : i32
    scf.if %18 {
      %cst_20 = arith.constant 0.000000e+00 : f32
      %35 = vector.broadcast %cst_20 : f32 to vector<1x128xf32>
      %c0_21 = arith.constant 0 : index
      %c0_22 = arith.constant 0 : index
      %c0_23 = arith.constant 0 : index
      %36 = vector.load %arg7[%c0_21, %c0_22, %c0_23] : memref<1x1x128xf32, #tpu.memory_space<vmem>>, vector<1x1x128xf32>
      %37 = vector.shape_cast %36 : vector<1x1x128xf32> to vector<1x128xf32>
      %38 = vector.shape_cast %35 : vector<1x128xf32> to vector<1x1x128xf32>
      tpu.vector_store %arg7[%c0_21, %c0_22, %c0_23], %38 {strides = array<i32>} : memref<1x1x128xf32, #tpu.memory_space<vmem>>, vector<1x1x128xf32>,
    } else {
    }
    %19 = vector.shape_cast %1 : vector<4x1xf32> to vector<1x4x1xf32>
    %cst = arith.constant dense<0.000000e+00> : vector<1xf32>
    %20 = vector.multi_reduction <add>, %19, %cst [1, 2] : vector<1x4x1xf32> to vector<1xf32>
    %21 = vector.shape_cast %20 : vector<1xf32> to vector<1x1x1xf32>
    %22 = vector.extract %21[0, 0, 0] : f32 from vector<1x1x1xf32>
    %23 = vector.shape_cast %5 : vector<1x128xf32> to vector<1x1x128xf32>
    %cst_13 = arith.constant dense<0.000000e+00> : vector<1xf32>
    %24 = vector.multi_reduction <add>, %23, %cst_13 [1, 2] : vector<1x1x128xf32> to vector<1xf32>
    %25 = vector.shape_cast %24 : vector<1xf32> to vector<1x1x1xf32>
    %26 = vector.extract %25[0, 0, 0] : f32 from vector<1x1x1xf32>
    %27 = arith.mulf %22, %26 : f32
    %c0_14 = arith.constant 0 : index
    %c0_15 = arith.constant 0 : index
    %c0_16 = arith.constant 0 : index
    %28 = vector.load %arg7[%c0_14, %c0_15, %c0_16] : memref<1x1x128xf32, #tpu.memory_space<vmem>>, vector<1x1x128xf32>
    %29 = vector.shape_cast %28 : vector<1x1x128xf32> to vector<1x128xf32>
    %30 = vector.broadcast %27 : f32 to vector<1x128xf32>
    %31 = arith.addf %29, %30 : vector<1x128xf32>
    %c0_17 = arith.constant 0 : index
    %c0_18 = arith.constant 0 : index
    %c0_19 = arith.constant 0 : index
    %32 = vector.load %arg7[%c0_17, %c0_18, %c0_19] : memref<1x1x128xf32, #tpu.memory_space<vmem>>, vector<1x1x128xf32>
    %33 = vector.shape_cast %32 : vector<1x1x128xf32> to vector<1x128xf32>
    %34 = vector.shape_cast %31 : vector<1x128xf32> to vector<1x1x128xf32>
    tpu.vector_store %arg7[%c0_17, %c0_18, %c0_19], %34 {strides = array<i32>} : memref<1x1x128xf32, #tpu.memory_space<vmem>>, vector<1x1x128xf32>,
    return
  }
  func.func @transform_0(%arg0: i32, %arg1: i32) -> (i32, i32) {
    %c0_i32 = arith.constant 0 : i32
    %c0_i32_0 = arith.constant 0 : i32
    %c0_i32_1 = arith.constant 0 : i32
    return %c0_i32, %c0_i32_0 : i32, i32
  }
  func.func @transform_1(%arg0: i32, %arg1: i32) -> (i32, i32) {
    %c0_i32 = arith.constant 0 : i32
    %c0_i32_0 = arith.constant 0 : i32
    %c0_i32_1 = arith.constant 0 : i32
    return %c0_i32, %c0_i32_0 : i32, i32
  }
  func.func @transform_2(%arg0: i32, %arg1: i32) -> (i32, i32, i32) {
    %c0_i32 = arith.constant 0 : i32
    %c0_i32_0 = arith.constant 0 : i32
    return %arg0, %c0_i32, %arg1 : i32, i32, i32
  }
  func.func @transform_3(%arg0: i32, %arg1: i32) -> (i32, i32, i32) {
    %c0_i32 = arith.constant 0 : i32
    %c0_i32_0 = arith.constant 0 : i32
    return %arg0, %c0_i32, %arg1 : i32, i32, i32
  }
  func.func @transform_4(%arg0: i32, %arg1: i32) -> (i32, i32, i32) {
    %c0_i32 = arith.constant 0 : i32
    %c0_i32_0 = arith.constant 0 : i32
    return %arg0, %c0_i32, %arg1 : i32, i32, i32
  }
  func.func @transform_5(%arg0: i32, %arg1: i32) -> (i32, i32, i32) {
    %c0_i32 = arith.constant 0 : i32
    %c0_i32_0 = arith.constant 0 : i32
    %c0_i32_1 = arith.constant 0 : i32
    return %arg0, %c0_i32, %c0_i32_0 : i32, i32, i32
  }
}

</mosaic_0001>

<llo_original>
// kernel: tpu_custom_call.1
$region0: #{tpu_custom_call.1}
  #allocation0 [shape = 'u32[]', space=smem, size = 0x4, offset = 0x4, fixed_abs, tag = 'smem constant byte address 0x4 - core index']
  #allocation1 [shape = 'u32[144,128]{1,0:T(1,128)}', space=vmem, size = 0x12000, scoped, tag = 'internal scratch']
  %s0 = inlined_call_operand.vmem [shape: f32[4,1], index: 0, kind: input, shape index: {}]
  %s1 = inlined_call_operand.vmem [shape: f32[4,1], index: 1, kind: input, shape index: {}]
  %s2 = inlined_call_operand.vmem [shape: f32[2,4,128], index: 2, kind: input, shape index: {}]
  %s3 = inlined_call_operand.vmem [shape: f32[2,1,128], index: 3, kind: input, shape index: {}]
  %s4 = inlined_call_operand.hbm [shape: f32[2,4,128], index: 4, kind: output, shape index: {0}]
  %s5 = inlined_call_operand.hbm [shape: f32[2,1,128], index: 5, kind: output, shape index: {1}]
  %6 = xla_tuple %s4, %s5
  %s7 = sld [smem:[#allocation0]]
  $region61: #{tpu_custom_call.1} parent=0
    _
  %s9 = ssub.s32 1, %s7
  %s10 = scalar_select 0, %s9, %s7
  $region1: #{tpu_custom_call.1} parent=0
    #allocation2 [shape = 'u8[4096]{0}', space=vmem, size = 0x1000, scoped, tag = 'output window, operand 0']
    #allocation3 [shape = 's32[2]{0}', space=sflag, size = 0x8, scoped, tag = 'scoped memory for tpu_custom_call.1']
    #allocation4 [shape = 'u8[1024]{0}', space=vmem, size = 0x400, scoped, tag = 'output window, operand 1']
    #allocation5 [shape = 's32[2]{0}', space=sflag, size = 0x8, scoped, tag = 'scoped memory for tpu_custom_call.1']
    %11 = vsyncpa [#allocation3], 0
    %s12 = scalar_lea.sflag [#allocation3], 1
    %13 = vsyncpa %s12, 0
    %14 = vsyncpa [#allocation5], 0
    %s15 = scalar_lea.sflag [#allocation5], 1
    %16 = vsyncpa %s15, 0
    loop: start=0, step=1, limit=4
    $region2: #{tpu_custom_call.1} parent=1 // loop_pre_header
      _
    $region3: #{tpu_custom_call.1} parent=1 // loop_header
      %s18 = sphi 0, %s22
      %p19 = scmp.ge.s32.totalorder %s18, 4
      %s25 = sphi 0, %s37
      %s26 = sphi 0, %s33
      %s27 = sphi 0, %s25
      %s28 = sphi 0, %s26
      %s29 = sphi 0, %s27
      %s30 = sphi 0, %s28
      %s38 = sphi 0, %s38
      %s40 = sphi 0, %s38
      %s41 = sphi 0, %s40
      %s55 = sphi 0, %s41
      %s59 = sphi 0, %s59
      %s61 = sphi 0, %s59
      %s62 = sphi 0, %s61
      %s76 = sphi 0, %s62
      %s84 = sphi 0, %s86
      %s87 = sphi 0, %s84
      %s88 = sphi 0, %s87
      %s104 = sphi 0, %s88
      %s112 = sphi 0, %s114
      %s115 = sphi 0, %s112
      %s116 = sphi 0, %s115
      %s132 = sphi 0, %s116
      %s140 = sphi 0, %s142
      %s143 = sphi 0, %s140
      %s144 = sphi 0, %s143
      %s160 = sphi 0, %s144
      %s166 = sphi 0, %s168
      %s169 = sphi 0, %s166
      %s170 = sphi 0, %s169
      %s186 = sphi 0, %s170
    $region4: #{tpu_custom_call.1} parent=1 // loop_header_branch
      %21 = sbr.rel (%p19) target = $region8
    $region5: #{tpu_custom_call.1} parent=1 // loop_body
      %s23 = ssub.s32 %s18, 1
      %s24 = ssub.s32 %s18, 2
      %s31 = sadd.s32 1, %s26
      %p32 = scmp.ge.s32.totalorder %s31, 1
      %s33 = scalar_select %p32, 0, %s31
      %s34 = sadd.s32 1, %s25
      %s35 = scalar_select %p32, %s34, %s25
      %p36 = scmp.ge.s32.totalorder %s35, 2
      %s37 = scalar_select %p36, 0, %s35
      %s39 = sadd.s32 %s38, 1
      %p42 = scmp.eq.s32.totalorder %s18, 1
      %p43 = scmp.ne.s32.totalorder %s38, %s40
      %p44 = scmp.eq.s32.totalorder %s18, 0
      %p45 = por %p43, %p44
      %p46 = scmp.ne.s32.totalorder %s38, %s40
      %p47 = scmp.eq.s32.totalorder %s23, 1
      %p48 = por %p46, %p47
      %p49 = scmp.ne.s32.totalorder %s40, %s41
      %p50 = scmp.eq.s32.totalorder %s23, 0
      %p51 = por %p49, %p50
      %p52 = scmp.ne.s32.totalorder %s40, %s41
      %p53 = scmp.eq.s32.totalorder %s24, 1
      %p54 = por %p52, %p53
      %p56 = scmp.ne.s32.totalorder %s41, %s55
      %p57 = scmp.eq.s32.totalorder %s24, 0
      %p58 = por %p56, %p57
      %s60 = sadd.s32 %s59, 1
      %p63 = scmp.eq.s32.totalorder %s18, 1
      %p64 = scmp.ne.s32.totalorder %s59, %s61
      %p65 = scmp.eq.s32.totalorder %s18, 0
      %p66 = por %p64, %p65
      %p67 = scmp.ne.s32.totalorder %s59, %s61
      %p68 = scmp.eq.s32.totalorder %s23, 1
      %p69 = por %p67, %p68
      %p70 = scmp.ne.s32.totalorder %s61, %s62
      %p71 = scmp.eq.s32.totalorder %s23, 0
      %p72 = por %p70, %p71
      %p73 = scmp.ne.s32.totalorder %s61, %s62
      %p74 = scmp.eq.s32.totalorder %s24, 1
      %p75 = por %p73, %p74
      %p77 = scmp.ne.s32.totalorder %s62, %s76
      %p78 = scmp.eq.s32.totalorder %s24, 0
      %p79 = por %p77, %p78
      %s80 = ssub.s32 %s25, %s37
      %s81 = ssub.s32 %s26, %s33
      %s82 = sor.u32 %s80, %s81
      %p83 = scmp.eq.s32.totalorder %s82, 0
      %s85 = sadd.s32 %s84, 1
      %s86 = scalar_select %p83, %s84, %s85
      %p89 = pneg %p83
      %p90 = scmp.eq.s32.totalorder %s18, 1
      %p91 = por %p89, %p90
      %p92 = scmp.ne.s32.totalorder %s84, %s87
      %p93 = scmp.eq.s32.totalorder %s18, 0
      %p94 = por %p92, %p93
      %p95 = scmp.ne.s32.totalorder %s84, %s87
      %p96 = scmp.eq.s32.totalorder %s23, 1
      %p97 = por %p95, %p96
      %p98 = scmp.ne.s32.totalorder %s87, %s88
      %p99 = scmp.eq.s32.totalorder %s23, 0
      %p100 = por %p98, %p99
      %p101 = scmp.ne.s32.totalorder %s87, %s88
      %p102 = scmp.eq.s32.totalorder %s24, 1
      %p103 = por %p101, %p102
      %p105 = scmp.ne.s32.totalorder %s88, %s104
      %p106 = scmp.eq.s32.totalorder %s24, 0
      %p107 = por %p105, %p106
      %s108 = ssub.s32 %s25, %s37
      %s109 = ssub.s32 %s26, %s33
      %s110 = sor.u32 %s108, %s109
      %p111 = scmp.eq.s32.totalorder %s110, 0
      %s113 = sadd.s32 %s112, 1
      %s114 = scalar_select %p111, %s112, %s113
      %p117 = pneg %p111
      %p118 = scmp.eq.s32.totalorder %s18, 1
      %p119 = por %p117, %p118
      %p120 = scmp.ne.s32.totalorder %s112, %s115
      %p121 = scmp.eq.s32.totalorder %s18, 0
      %p122 = por %p120, %p121
      %p123 = scmp.ne.s32.totalorder %s112, %s115
      %p124 = scmp.eq.s32.totalorder %s23, 1
      %p125 = por %p123, %p124
      %p126 = scmp.ne.s32.totalorder %s115, %s116
      %p127 = scmp.eq.s32.totalorder %s23, 0
      %p128 = por %p126, %p127
      %p129 = scmp.ne.s32.totalorder %s115, %s116
      %p130 = scmp.eq.s32.totalorder %s24, 1
      %p131 = por %p129, %p130
      %p133 = scmp.ne.s32.totalorder %s116, %s132
      %p134 = scmp.eq.s32.totalorder %s24, 0
      %p135 = por %p133, %p134
      %s136 = ssub.s32 %s25, %s37
      %s137 = ssub.s32 %s26, %s33
      %s138 = sor.u32 %s136, %s137
      %p139 = scmp.eq.s32.totalorder %s138, 0
      %s141 = sadd.s32 %s140, 1
      %s142 = scalar_select %p139, %s140, %s141
      %p145 = pneg %p139
      %p146 = scmp.eq.s32.totalorder %s18, 1
      %p147 = por %p145, %p146
      %p148 = scmp.ne.s32.totalorder %s140, %s143
      %p149 = scmp.eq.s32.totalorder %s18, 0
      %p150 = por %p148, %p149
      %p151 = scmp.ne.s32.totalorder %s140, %s143
      %p152 = scmp.eq.s32.totalorder %s23, 1
      %p153 = por %p151, %p152
      %p154 = scmp.ne.s32.totalorder %s143, %s144
      %p155 = scmp.eq.s32.totalorder %s23, 0
      %p156 = por %p154, %p155
      %p157 = scmp.ne.s32.totalorder %s143, %s144
      %p158 = scmp.eq.s32.totalorder %s24, 1
      %p159 = por %p157, %p158
      %p161 = scmp.ne.s32.totalorder %s144, %s160
      %p162 = scmp.eq.s32.totalorder %s24, 0
      %p163 = por %p161, %p162
      %s164 = ssub.s32 %s25, %s37
      %p165 = scmp.eq.s32.totalorder %s164, 0
      %s167 = sadd.s32 %s166, 1
      %s168 = scalar_select %p165, %s166, %s167
      %p171 = pneg %p165
      %p172 = scmp.eq.s32.totalorder %s18, 1
      %p173 = por %p171, %p172
      %p174 = scmp.ne.s32.totalorder %s166, %s169
      %p175 = scmp.eq.s32.totalorder %s18, 0
      %p176 = por %p174, %p175
      %p177 = scmp.ne.s32.totalorder %s166, %s169
      %p178 = scmp.eq.s32.totalorder %s23, 1
      %p179 = por %p177, %p178
      %p180 = scmp.ne.s32.totalorder %s169, %s170
      %p181 = scmp.eq.s32.totalorder %s23, 0
      %p182 = por %p180, %p181
      %p183 = scmp.ne.s32.totalorder %s169, %s170
      %p184 = scmp.eq.s32.totalorder %s24, 1
      %p185 = por %p183, %p184
      %p187 = scmp.ne.s32.totalorder %s170, %s186
      %p188 = scmp.eq.s32.totalorder %s24, 0
      %p189 = por %p187, %p188
      %p190 = scmp.le.s32.totalorder 1, %s18
      %p191 = scmp.lt.s32.totalorder %s18, 3
      %p192 = pnand %p190, %p191
      %p193 = pneg %p192
      // Predicated region
      $region9: #{tpu_custom_call.1} parent=5 // pred_check
        _
      $region10: #{tpu_custom_call.1} parent=5 // pred_check_branch
        %195 = sbr.rel (%p192) target = $region12
      $region11: #{tpu_custom_call.1} parent=5 // pred_region
        %s196 = ssub.s32 %s18, 1
        // Predicated region
        $region13: #{tpu_custom_call.1} parent=11 // pred_check
          %p197 = pneg %p51
        $region14: #{tpu_custom_call.1} parent=11 // pred_check_branch
          %199 = sbr.rel (%p197) target = $region16
        $region15: #{tpu_custom_call.1} parent=11 // pred_region
          _
        $region16: #{tpu_custom_call.1} parent=11 // pred_fallthru
          _
        // Predicated region
        $region17: #{tpu_custom_call.1} parent=11 // pred_check
          %p200 = pneg %p72
        $region18: #{tpu_custom_call.1} parent=11 // pred_check_branch
          %202 = sbr.rel (%p200) target = $region20
        $region19: #{tpu_custom_call.1} parent=11 // pred_region
          _
        $region20: #{tpu_custom_call.1} parent=11 // pred_fallthru
          _
      $region12: #{tpu_custom_call.1} parent=5 // pred_fallthru
        _
      %p203 = scmp.lt.s32.totalorder %s18, 2
      // Predicated region
      $region21: #{tpu_custom_call.1} parent=5 // pred_check
        %p204 = pneg %p203
      $region22: #{tpu_custom_call.1} parent=5 // pred_check_branch
        %206 = sbr.rel (%p204) target = $region24
      $region23: #{tpu_custom_call.1} parent=5 // pred_region
        // Predicated region
        $region25: #{tpu_custom_call.1} parent=23 // pred_check
          %p207 = pneg %p94
        $region26: #{tpu_custom_call.1} parent=23 // pred_check_branch
          %209 = sbr.rel (%p207) target = $region28
        $region27: #{tpu_custom_call.1} parent=23 // pred_region
          %p210 = scmp.lt.s32.totalorder %s25, 1
          %s211 = scalar_select %p210, %s25, 1
          %p212 = scmp.lt.s32.totalorder %s26, 0
          %s213 = scalar_select %p212, %s26, 0
          %s214 = sadd.s32 %s213, %s211
          %s215 = smul.addr %s214, 4
          %s216 = scalar_lea.vmem %s2, %s215
        $region28: #{tpu_custom_call.1} parent=23 // pred_fallthru
          _
        // Predicated region
        $region29: #{tpu_custom_call.1} parent=23 // pred_check
          %p217 = pneg %p122
        $region30: #{tpu_custom_call.1} parent=23 // pred_check_branch
          %219 = sbr.rel (%p217) target = $region32
        $region31: #{tpu_custom_call.1} parent=23 // pred_region
          %p220 = scmp.lt.s32.totalorder %s25, 1
          %s221 = scalar_select %p220, %s25, 1
          %p222 = scmp.lt.s32.totalorder %s26, 0
          %s223 = scalar_select %p222, %s26, 0
          %s224 = sadd.s32 %s223, %s221
          %s225 = scalar_lea.vmem %s3, %s224
        $region32: #{tpu_custom_call.1} parent=23 // pred_fallthru
          _
      $region24: #{tpu_custom_call.1} parent=5 // pred_fallthru
        _
      %p226 = scmp.le.s32.totalorder 1, %s18
      %p227 = scmp.lt.s32.totalorder %s18, 3
      %p228 = pnand %p226, %p227
      %p229 = pneg %p228
      // Predicated region
      $region33: #{tpu_custom_call.1} parent=5 // pred_check
        _
      $region34: #{tpu_custom_call.1} parent=5 // pred_check_branch
        %231 = sbr.rel (%p228) target = $region36
      $region35: #{tpu_custom_call.1} parent=5 // pred_region
        %s232 = ssub.s32 %s18, 1
        %p233 = pneg %p51
        %p234 = pneg %p48
        %p235 = pneg %p72
        %p236 = pneg %p69
        %p237 = scmp.lt.s32.totalorder %s27, 1
        %s238 = scalar_select %p237, %s27, 1
        %p239 = scmp.lt.s32.totalorder %s28, 0
        %s240 = scalar_select %p239, %s28, 0
        %s241 = sadd.s32 %s240, %s238
        %s242 = smul.addr %s241, 4
        %s243 = scalar_lea.vmem %s2, %s242
        %p244 = pneg %p100
        %p245 = pneg %p97
        %p246 = scmp.lt.s32.totalorder %s27, 1
        %s247 = scalar_select %p246, %s27, 1
        %p248 = scmp.lt.s32.totalorder %s28, 0
        %s249 = scalar_select %p248, %s28, 0
        %s250 = sadd.s32 %s249, %s247
        %s251 = scalar_lea.vmem %s3, %s250
        %p252 = pneg %p128
        %p253 = pneg %p125
        %p254 = pneg %p156
        %p255 = pneg %p153
        %s256 = sand.u32 %s143, 1
        %s257 = scalar_lea.sflag [#allocation3], %s256
        %s258 = sand.u32 %s143, 1
        %s259 = smul.addr %s258, 4
        %s260 = scalar_lea.vmem [#allocation2], %s259
        %p261 = pneg %p182
        %p262 = pneg %p179
        %s263 = sand.u32 %s169, 1
        %s264 = scalar_lea.sflag [#allocation5], %s263
        %s265 = sand.u32 %s169, 1
        %s266 = scalar_lea.vmem [#allocation4], %s265
        %p267 = scmp.lt.s32.totalorder %s27, 1
        %s268 = scalar_select %p267, %s27, 1
        %p269 = scmp.lt.s32.totalorder %s28, 0
        %s270 = scalar_select %p269, %s28, 0
        %s271 = sadd.s32 %s270, %s268
        %s272 = smul.addr %s271, 4
        %s273 = scalar_lea.vmem %s2, %s272
        %p274 = scmp.lt.s32.totalorder %s27, 1
        %s275 = scalar_select %p274, %s27, 1
        %p276 = scmp.lt.s32.totalorder %s28, 0
        %s277 = scalar_select %p276, %s28, 0
        %s278 = sadd.s32 %s277, %s275
        %s279 = scalar_lea.vmem %s3, %s278
        %v280 = vld [vmem:[%s0] sm:$0xf]
        %v281 = vld [vmem:[%s1] sm:$0xf]
        %v282 = vld [vmem:[%s273] sm:$0xf]
        %v283 = vld [vmem:[%s279] sm:$0x1]
        %v284 = vmul.f32 %v281, 1.442695
        %v285 = vpow.pop %v284
        %287 = vset.pattern.permute.xlu0 0
        %288 = vperm.xlu0 %287, %v285
        %v289 = vpop.permute.xlu0 %288
        %v291 = vmul.f32 %v289, %v282
        %293 = vset.pattern.permute.xlu0 0
        %294 = vperm.xlu0 %293, %v280
        %v295 = vpop.permute.xlu0 %294
        %v297 = vadd.f32 %v295, %v291
        %v299 = vlaneseq
        %v300 = vshrl.u32 %v299, 7
        %v301 = vsub.s32 0, %v300
        %v302 = vrot.slane %v283, %v301
        %v304 = vmul.f32 %v297, %v302
        %305 = vst [vmem:[%s260] sm:$0xf] %v304
        %p306 = scmp.eq.s32.totalorder %s28, 0
        // Predicated region
        $region37: #{tpu_custom_call.1} parent=35 // pred_check
          %p307 = pneg %p306
        $region38: #{tpu_custom_call.1} parent=35 // pred_check_branch
          %309 = sbr.rel (%p307) target = $region40
        $region39: #{tpu_custom_call.1} parent=35 // pred_region
          %310 = vst [vmem:[%s266] sm:$0x1] 0.0
        $region40: #{tpu_custom_call.1} parent=35 // pred_fallthru
          _
        %vm311 = vcmask 3072
        %v312 = vsel %vm311, %v281, 0.0
        %313 = vadd.xlane.f32.xlu0 %v312
        %v314 = vpop.xlane.xlu0 %313
        %v315 = vrot.slane %v314, 4
        %v316 = vadd.f32 %v314, %v315
        %v317 = vrot.slane %v316, 2
        %v318 = vadd.f32 %v316, %v317
        %v319 = vrot.slane %v318, 1
        %v320 = vadd.f32 %v318, %v319
        %s321 = vtos %v320
        %vm322 = vcmask 1040384
        %v323 = vsel %vm322, %v283, 0.0
        %324 = vadd.xlane.f32.xlu0 %v323
        %v325 = vpop.xlane.xlu0 %324
        %v326 = vrot.slane %v325, 4
        %v327 = vadd.f32 %v325, %v326
        %v328 = vrot.slane %v327, 2
        %v329 = vadd.f32 %v327, %v328
        %v330 = vrot.slane %v329, 1
        %v331 = vadd.f32 %v329, %v330
        %s332 = vtos %v331
        %s333 = smul.f32 %s321, %s332
        %v334 = vld [vmem:[%s266] sm:$0x1]
        %v335 = vstv %s333
        %v336 = vadd.f32 %v334, %v335
        %337 = vst [vmem:[%s266] sm:$0x1] %v336
        %s338 = sand.u32 %s143, 1
        %s339 = scalar_lea.sflag [#allocation3], %s338
        %s340 = sand.u32 %s143, 1
        %s341 = smul.addr %s340, 4
        %s342 = scalar_lea.vmem [#allocation2], %s341
        %s343 = sand.u32 %s169, 1
        %s344 = scalar_lea.sflag [#allocation5], %s343
        %s345 = sand.u32 %s169, 1
        %s346 = scalar_lea.vmem [#allocation4], %s345
        // Predicated region
        $region41: #{tpu_custom_call.1} parent=35 // pred_check
          %p347 = pneg %p153
        $region42: #{tpu_custom_call.1} parent=35 // pred_check_branch
          %349 = sbr.rel (%p347) target = $region44
        $region43: #{tpu_custom_call.1} parent=35 // pred_region
          %s351 = ssub.s32 64, 64
          %352 = vsyncadd %s339, %s351
          %s353 = sadd.s32 %s28, %s27
          %s354 = smul.addr %s353, 64
          %s355 = scalar_lea.hbm %s4, %s354
          %s357 = sshll.u32 %s342, 4
          %s358 = int_to_ptr.vmem [resolvable:$true] %s357
          %360 = dma.vmem_to_hbm [thread:$0]  %s358, 64, %s355, %s339
        $region44: #{tpu_custom_call.1} parent=35 // pred_fallthru
          _
        // Predicated region
        $region45: #{tpu_custom_call.1} parent=35 // pred_check
          %p361 = pneg %p179
        $region46: #{tpu_custom_call.1} parent=35 // pred_check_branch
          %363 = sbr.rel (%p361) target = $region48
        $region47: #{tpu_custom_call.1} parent=35 // pred_region
          %s365 = ssub.s32 16, 16
          %366 = vsyncadd %s344, %s365
          %s367 = smul.addr %s27, 16
          %s368 = scalar_lea.hbm %s5, %s367
          %s370 = sshll.u32 %s346, 4
          %s371 = int_to_ptr.vmem [resolvable:$true] %s370
          %373 = dma.vmem_to_hbm [thread:$0]  %s371, 16, %s368, %s344
        $region48: #{tpu_custom_call.1} parent=35 // pred_fallthru
          _
      $region36: #{tpu_custom_call.1} parent=5 // pred_fallthru
        _
      %p374 = scmp.le.s32.totalorder 2, %s18
      // Predicated region
      $region49: #{tpu_custom_call.1} parent=5 // pred_check
        %p375 = pneg %p374
      $region50: #{tpu_custom_call.1} parent=5 // pred_check_branch
        %377 = sbr.rel (%p375) target = $region52
      $region51: #{tpu_custom_call.1} parent=5 // pred_region
        %s378 = ssub.s32 %s18, 2
        // Predicated region
        $region53: #{tpu_custom_call.1} parent=51 // pred_check
          %p379 = pneg %p159
        $region54: #{tpu_custom_call.1} parent=51 // pred_check_branch
          %381 = sbr.rel (%p379) target = $region56
        $region55: #{tpu_custom_call.1} parent=51 // pred_region
          %s382 = sand.u32 %s144, 1
          %s383 = scalar_lea.sflag [#allocation3], %s382
          %s384 = sand.u32 %s144, 1
          %s385 = smul.addr %s384, 4
          %s386 = scalar_lea.vmem [#allocation2], %s385
          %387 = dma.done %s383, 64
        $region56: #{tpu_custom_call.1} parent=51 // pred_fallthru
          _
        // Predicated region
        $region57: #{tpu_custom_call.1} parent=51 // pred_check
          %p388 = pneg %p185
        $region58: #{tpu_custom_call.1} parent=51 // pred_check_branch
          %390 = sbr.rel (%p388) target = $region60
        $region59: #{tpu_custom_call.1} parent=51 // pred_region
          %s391 = sand.u32 %s170, 1
          %s392 = scalar_lea.sflag [#allocation5], %s391
          %s393 = sand.u32 %s170, 1
          %s394 = scalar_lea.vmem [#allocation4], %s393
          %395 = dma.done %s392, 16
        $region60: #{tpu_custom_call.1} parent=51 // pred_fallthru
          _
      $region52: #{tpu_custom_call.1} parent=5 // pred_fallthru
        _
    $region6: #{tpu_custom_call.1} parent=1 // loop_footer
      %s22 = sadd.s32 1, %s18
    $region7: #{tpu_custom_call.1} parent=1 // loop_footer_branch
      %17 = sbr.rel target = $region3
    $region8: #{tpu_custom_call.1} parent=1 // loop_exit
      _
    %396 = vsyncpa [#allocation3], 1
    %s397 = scalar_lea.sflag [#allocation3], 1
    %398 = vsyncpa %s397, 1
    %399 = vsyncpa [#allocation5], 1
    %s400 = scalar_lea.sflag [#allocation5], 1
    %401 = vsyncpa %s400, 1

</llo_original>
